<compile_context>
chip_gen: v7x
topology: tpu7x:2x2x1
jax: 0.10.0
libtpu: 0.0.40
codegen_flags: <defaults>
</compile_context>

<pallas_src>
import jax
import jax.numpy as jnp
from jax import lax
from jax.experimental import pallas as pl
from jax.experimental.pallas import tpu as pltpu


def _round_up(x, m):
    return ((x + m - 1) // m) * m


def _conv_bn_relu_kernel(p_ref, w_ref, b_ref, o_ref):
    # p_ref: (TM, K)  w_ref: (K, Cout_p)  b_ref: (1, Cout_p)  o_ref: (TM, Cout_p)
    acc = jnp.dot(p_ref[...], w_ref[...], preferred_element_type=jnp.float32)
    o_ref[...] = jnp.maximum(acc + b_ref[...], 0.0).astype(o_ref.dtype)


def _fused_matmul_bn_relu(patches, w_folded, shift, *, tile_m=1024):
    """patches: (M, K) f32, w_folded: (K, Cout) f32 (BN scale folded in),
    shift: (Cout,) f32 (BN shift).  Returns relu(patches @ w_folded + shift): (M, Cout)."""
    M, K = patches.shape
    Cout = w_folded.shape[1]

    # Lane-dense output: pad Cout up to a multiple of 128 (unmasked vector stores).
    Cout_p = _round_up(Cout, 128)

    # Cap the per-step input tile so the double-buffered patches tile stays ~<=16 MiB
    # (safe under v7x's 32 MiB scoped VMEM default), then round M up to the tile.
    max_tile_rows = max(8, (((8 * 1024 * 1024) // (K * 4)) // 8) * 8)
    tile_m_eff = min(tile_m, max_tile_rows, _round_up(M, 8))
    M_pad = _round_up(M, tile_m_eff)

    if M_pad != M:
        patches = jnp.pad(patches, ((0, M_pad - M), (0, 0)))
    if Cout_p != Cout:
        w_folded = jnp.pad(w_folded, ((0, 0), (0, Cout_p - Cout)))
        shift = jnp.pad(shift, ((0, Cout_p - Cout),))
    bias2d = shift.reshape(1, Cout_p)

    grid_m = M_pad // tile_m_eff

    out = pl.pallas_call(
        _conv_bn_relu_kernel,
        out_shape=jax.ShapeDtypeStruct((M_pad, Cout_p), patches.dtype),
        grid_spec=pltpu.PrefetchScalarGridSpec(
            num_scalar_prefetch=0,
            grid=(grid_m,),
            in_specs=[
                pl.BlockSpec((tile_m_eff, K), lambda i: (i, 0)),
                pl.BlockSpec((K, Cout_p), lambda i: (0, 0)),
                pl.BlockSpec((1, Cout_p), lambda i: (0, 0)),
            ],
            out_specs=pl.BlockSpec((tile_m_eff, Cout_p), lambda i: (i, 0)),
        ),
        compiler_params=pltpu.CompilerParams(
            dimension_semantics=("parallel",),
        ),
    )(patches, w_folded, bias2d)

    return out[:M, :Cout]


def feature_fusion3_forward(x, conv_weight, bn_gamma, bn_beta, bn_mean, bn_var,
                            *, eps=1e-5, stride=8, pad=1, tile_m=1024):
    """Pallas-backed equivalent of FeatureFusion_3.forward (eval mode).

    x:           (N, Cin, D, H, W)      float32, NCDHW
    conv_weight: (Cout, Cin, 3, 3, 3)   PyTorch Conv3d weight layout (bias=False)
    bn_*:        (Cout,)                BatchNorm3d affine params + running stats
    returns:     (N, Cout, Do, Ho, Wo)  with Do = (D + 2 - 3)//8 + 1, etc.
    """
    N, Cin, D, H, W = x.shape
    Cout, _, kD, kH, kW = conv_weight.shape

    # --- reflect padding (padding_mode='reflect', padding=1), cheap glue ---
    xp = jnp.pad(x, ((0, 0), (0, 0), (pad, pad), (pad, pad), (pad, pad)), mode="reflect")

    Do = (D + 2 * pad - kD) // stride + 1
    Ho = (H + 2 * pad - kH) // stride + 1
    Wo = (W + 2 * pad - kW) // stride + 1

    # --- im2col: stride-8, kernel-3 patches cover only 27/512 of the volume ---
    cols = []
    for kd in range(kD):
        for kh in range(kH):
            for kw in range(kW):
                sl = lax.slice(
                    xp,
                    (0, 0, kd, kh, kw),
                    (N, Cin,
                     kd + stride * (Do - 1) + 1,
                     kh + stride * (Ho - 1) + 1,
                     kw + stride * (Wo - 1) + 1),
                    (1, 1, stride, stride, stride),
                )  # (N, Cin, Do, Ho, Wo)
                cols.append(sl)
    patches = jnp.stack(cols, axis=2)                       # (N, Cin, 27, Do, Ho, Wo)
    patches = jnp.transpose(patches, (0, 3, 4, 5, 1, 2))    # (N, Do, Ho, Wo, Cin, 27)
    M = N * Do * Ho * Wo
    K = Cin * kD * kH * kW
    patches = patches.reshape(M, K)

    # --- fold eval-mode BatchNorm into the conv:  y = conv(x)*scale + shift ---
    scale = bn_gamma * lax.rsqrt(bn_var + eps)              # (Cout,)
    shift = bn_beta - bn_mean * scale                       # (Cout,)
    w_mat = conv_weight.reshape(Cout, K).T                  # (K, Cout), same (cin,kd,kh,kw) order
    w_folded = w_mat * scale[None, :]

    # --- Pallas fused matmul + bias + ReLU ---
    out_flat = _fused_matmul_bn_relu(patches, w_folded, shift, tile_m=tile_m)  # (M, Cout)

    out = out_flat.reshape(N, Do, Ho, Wo, Cout)             # tiny tensor (8x downsampled/dim)
    return jnp.transpose(out, (0, 4, 1, 2, 3))              # NCDHW


def _reference_forward(x, conv_weight, bn_gamma, bn_beta, bn_mean, bn_var, eps=1e-5):
    """Plain-JAX reference (mirrors the PyTorch module in eval mode)."""
    xp = jnp.pad(x, ((0, 0), (0, 0), (1, 1), (1, 1), (1, 1)), mode="reflect")
    out = lax.conv_general_dilated(
        xp, conv_weight, window_strides=(8, 8, 8), padding="VALID",
        dimension_numbers=("NCDHW", "OIDHW", "NCDHW"),
        precision=lax.Precision.HIGHEST,
    )
    scale = bn_gamma * lax.rsqrt(bn_var + eps)
    shift = bn_beta - bn_mean * scale
    out = out * scale[None, :, None, None, None] + shift[None, :, None, None, None]
    return jnp.maximum(out, 0.0)


if __name__ == "__main__":
    key = jax.random.PRNGKey(0)
    k1, k2, k3, k4, k5, k6 = jax.random.split(key, 6)

    # Small shapes: batch=2, in_channel=4, out_channel=8, spatial=16 -> output spatial 2.
    N, Cin, D, H, W = 2, 4, 16, 16, 16
    Cout = 8

    x = jax.random.normal(k1, (N, Cin, D, H, W), dtype=jnp.float32)
    conv_weight = jax.random.normal(k2, (Cout, Cin, 3, 3, 3), dtype=jnp.float32) * 0.1
    bn_gamma = jax.random.uniform(k3, (Cout,), dtype=jnp.float32, minval=0.5, maxval=1.5)
    bn_beta = jax.random.normal(k4, (Cout,), dtype=jnp.float32) * 0.1
    bn_mean = jax.random.normal(k5, (Cout,), dtype=jnp.float32) * 0.1
    bn_var = jax.random.uniform(k6, (Cout,), dtype=jnp.float32, minval=0.5, maxval=1.5)

    out = feature_fusion3_forward(x, conv_weight, bn_gamma, bn_beta, bn_mean, bn_var)
    out = jax.block_until_ready(out)

    ref = _reference_forward(x, conv_weight, bn_gamma, bn_beta, bn_mean, bn_var)
    Do = (D + 2 - 3) // 8 + 1
    assert out.shape == (N, Cout, Do, Do, Do), out.shape
    assert jnp.allclose(out, ref, atol=1e-4, rtol=1e-4), "mismatch vs reference"

    print("KERNEL_OK")
</pallas_src>

<mosaic_0001>
module attributes {stable_mosaic.version = 11 : i64} {
  func.func @_conv_bn_relu_kernel(%arg0: i32, %arg1: memref<16x108xf32, #tpu.memory_space<vmem>>, %arg2: memref<108x128xf32, #tpu.memory_space<vmem>>, %arg3: memref<1x128xf32, #tpu.memory_space<vmem>>, %arg4: memref<16x128xf32, #tpu.memory_space<vmem>>) attributes {dimension_semantics = [#tpu.dimension_semantics<parallel>], iteration_bounds = array<i64: 1>, scalar_prefetch = 0 : i64, scratch_operands = 0 : i64, tpu.core_type = #tpu.core_type<tc>, window_params = [{transform_indices = @transform_0, window_bounds = array<i64: 16, 108>}, {pipeline_mode = #tpu.pipeline_mode<synchronous>, transform_indices = @transform_1, window_bounds = array<i64: 108, 128>}, {pipeline_mode = #tpu.pipeline_mode<synchronous>, transform_indices = @transform_2, window_bounds = array<i64: 1, 128>}, {transform_indices = @transform_3, window_bounds = array<i64: 16, 128>}]} {
    %c0 = arith.constant 0 : index
    %c0_0 = arith.constant 0 : index
    %0 = vector.load %arg1[%c0, %c0_0] : memref<16x108xf32, #tpu.memory_space<vmem>>, vector<16x108xf32>
    %c0_1 = arith.constant 0 : index
    %c0_2 = arith.constant 0 : index
    %1 = vector.load %arg2[%c0_1, %c0_2] : memref<108x128xf32, #tpu.memory_space<vmem>>, vector<108x128xf32>
    %cst = arith.constant dense<0.000000e+00> : vector<16x128xf32>
    %2 = tpu.matmul %0, %1, %cst {dimension_numbers = #tpu.dot_dimension_numbers<[1], [0], [0], [1], [0, 0, 1, 1], [], []>} : vector<16x108xf32>, vector<108x128xf32>, vector<16x128xf32> -> vector<16x128xf32>
    %c0_3 = arith.constant 0 : index
    %c0_4 = arith.constant 0 : index
    %3 = vector.load %arg3[%c0_3, %c0_4] : memref<1x128xf32, #tpu.memory_space<vmem>>, vector<1x128xf32>
    %4 = vector.broadcast %3 : vector<1x128xf32> to vector<16x128xf32>
    %5 = arith.addf %2, %4 : vector<16x128xf32>
    %cst_5 = arith.constant 0.000000e+00 : f32
    %6 = vector.broadcast %cst_5 : f32 to vector<16x128xf32>
    %7 = arith.maximumf %5, %6 : vector<16x128xf32>
    %c0_6 = arith.constant 0 : index
    %c0_7 = arith.constant 0 : index
    %8 = vector.load %arg4[%c0_6, %c0_7] : memref<16x128xf32, #tpu.memory_space<vmem>>, vector<16x128xf32>
    tpu.vector_store %arg4[%c0_6, %c0_7], %7 {strides = array<i32>} : memref<16x128xf32, #tpu.memory_space<vmem>>, vector<16x128xf32>,
    return
  }
  func.func @transform_0(%arg0: i32) -> (i32, i32) {
    %c0_i32 = arith.constant 0 : i32
    %c0_i32_0 = arith.constant 0 : i32
    return %arg0, %c0_i32 : i32, i32
  }
  func.func @transform_1(%arg0: i32) -> (i32, i32) {
    %c0_i32 = arith.constant 0 : i32
    %c0_i32_0 = arith.constant 0 : i32
    %c0_i32_1 = arith.constant 0 : i32
    return %c0_i32, %c0_i32_0 : i32, i32
  }
  func.func @transform_2(%arg0: i32) -> (i32, i32) {
    %c0_i32 = arith.constant 0 : i32
    %c0_i32_0 = arith.constant 0 : i32
    %c0_i32_1 = arith.constant 0 : i32
    return %c0_i32, %c0_i32_0 : i32, i32
  }
  func.func @transform_3(%arg0: i32) -> (i32, i32) {
    %c0_i32 = arith.constant 0 : i32
    %c0_i32_0 = arith.constant 0 : i32
    return %arg0, %c0_i32 : i32, i32
  }
}

</mosaic_0001>

<llo_original>
// kernel: tpu_custom_call.1
$region0: #{tpu_custom_call.1}
  #allocation0 [shape = 'u32[]', space=smem, size = 0x4, offset = 0x4, fixed_abs, tag = 'smem constant byte address 0x4 - core index']
  #allocation1 [shape = 'u32[144,128]{1,0:T(1,128)}', space=vmem, size = 0x12000, scoped, tag = 'internal scratch']
  %s0 = inlined_call_operand.hbm [shape: f32[16,108], index: 0, kind: input, shape index: {}]
  %s1 = inlined_call_operand.hbm [shape: f32[108,128], index: 1, kind: input, shape index: {}]
  %s2 = inlined_call_operand.vmem [shape: f32[1,128], index: 2, kind: input, shape index: {}]
  %s3 = inlined_call_operand.hbm [shape: f32[16,128], index: 3, kind: output, shape index: {}]
  %s4 = sld [smem:[#allocation0]]
  $region30: #{tpu_custom_call.1} parent=0
    _
  %s6 = ssub.s32 1, %s4
  %s7 = scalar_select 0, %s6, %s4
  $region1: #{tpu_custom_call.1} parent=0
    #allocation2 [shape = 'u8[8192]{0}', space=vmem, size = 0x2000, scoped, tag = 'input window, operand 0, single buffered']
    #allocation3 [shape = 's32[1]{0}', space=sflag, size = 0x4, scoped, tag = 'scoped memory for tpu_custom_call.1']
    #allocation4 [shape = 's32[1]{0}', space=sflag, size = 0x4, scoped, tag = 'scoped memory for tpu_custom_call.1']
    #allocation5 [shape = 'u8[57344]{0}', space=vmem, size = 0xe000, scoped, tag = 'input window, operand 1, single buffered']
    #allocation6 [shape = 's32[1]{0}', space=sflag, size = 0x4, scoped, tag = 'scoped memory for tpu_custom_call.1']
    #allocation7 [shape = 'u8[8192]{0}', space=vmem, size = 0x2000, scoped, tag = 'output window, operand 0, single buffered']
    %8 = vsyncpa [#allocation3], 0
    %9 = vsyncpa [#allocation6], 0
    %10 = vsyncpa [#allocation4], 0
    // Predicated region
    $region2: #{tpu_custom_call.1} parent=1 // pred_check
      _
    $region3: #{tpu_custom_call.1} parent=1 // pred_check_branch
      %12 = sbr.rel (0) target = $region5
    $region4: #{tpu_custom_call.1} parent=1 // pred_region
      %s14 = ssub.s32 256, 256
      %15 = vsyncadd [#allocation3], %s14
      %s16 = sshll.u32 [#allocation2], 4
      %s17 = int_to_ptr.vmem [resolvable:$true] %s16
      %22 = dma.hbm_to_vmem [thread:$0]  %s0, 256, %s17, [#allocation3], 128, 128, 8
    $region5: #{tpu_custom_call.1} parent=1 // pred_fallthru
      _
    // Predicated region
    $region6: #{tpu_custom_call.1} parent=1 // pred_check
      _
    $region7: #{tpu_custom_call.1} parent=1 // pred_check_branch
      %24 = sbr.rel (0) target = $region9
    $region8: #{tpu_custom_call.1} parent=1 // pred_region
      %s26 = ssub.s32 1792, 1792
      %27 = vsyncadd [#allocation6], %s26
      %s28 = sshll.u32 [#allocation5], 4
      %s29 = int_to_ptr.vmem [resolvable:$true] %s28
      %34 = dma.hbm_to_vmem [thread:$0]  %s1, 1792, %s29, [#allocation6], 128, 128, 8
    $region9: #{tpu_custom_call.1} parent=1 // pred_fallthru
      _
    // Predicated region
    $region10: #{tpu_custom_call.1} parent=1 // pred_check
      _
    $region11: #{tpu_custom_call.1} parent=1 // pred_check_branch
      %36 = sbr.rel (0) target = $region13
    $region12: #{tpu_custom_call.1} parent=1 // pred_region
      _
    $region13: #{tpu_custom_call.1} parent=1 // pred_fallthru
      _
    // Predicated region
    $region14: #{tpu_custom_call.1} parent=1 // pred_check
      _
    $region15: #{tpu_custom_call.1} parent=1 // pred_check_branch
      %38 = sbr.rel (0) target = $region17
    $region16: #{tpu_custom_call.1} parent=1 // pred_region
      %39 = dma.done [#allocation3], 256
    $region17: #{tpu_custom_call.1} parent=1 // pred_fallthru
      _
    // Predicated region
    $region18: #{tpu_custom_call.1} parent=1 // pred_check
      _
    $region19: #{tpu_custom_call.1} parent=1 // pred_check_branch
      %41 = sbr.rel (0) target = $region21
    $region20: #{tpu_custom_call.1} parent=1 // pred_region
      %42 = dma.done [#allocation6], 1792
    $region21: #{tpu_custom_call.1} parent=1 // pred_fallthru
      _
    %v43 = vld [vmem:[#allocation2] sm:$0xff]
    %v44 = vld [vmem:[#allocation2 + $0x8] sm:$0xff]
    %v45 = vld [vmem:[#allocation5] sm:$0xff]
    %v46 = vld [vmem:[#allocation5 + $0x8] sm:$0xff]
    %v47 = vld [vmem:[#allocation5 + $0x10] sm:$0xff]
    %v48 = vld [vmem:[#allocation5 + $0x18] sm:$0xff]
    %v49 = vld [vmem:[#allocation5 + $0x20] sm:$0xff]
    %v50 = vld [vmem:[#allocation5 + $0x28] sm:$0xff]
    %v51 = vld [vmem:[#allocation5 + $0x30] sm:$0xff]
    %v52 = vld [vmem:[#allocation5 + $0x38] sm:$0xff]
    %v53 = vld [vmem:[#allocation5 + $0x40] sm:$0xff]
    %v54 = vld [vmem:[#allocation5 + $0x48] sm:$0xff]
    %v55 = vld [vmem:[#allocation5 + $0x50] sm:$0xff]
    %v56 = vld [vmem:[#allocation5 + $0x58] sm:$0xff]
    %v57 = vld [vmem:[#allocation5 + $0x60] sm:$0xff]
    %v58 = vld [vmem:[#allocation5 + $0x68] sm:$0xf]
    %v59 = vld [vmem:[%s2] sm:$0x1]
    %v61 = vlaneseq
    %v62 = vshrl.u32 %v61, 7
    %v63 = vsub.s32 0, %v62
    %v64 = vrot.slane %v59, %v63
    %vm66 = vcmask 883712
    %v68 = vsel %vm66, %v43, 0
    %v71 = vsel %vm66, %v44, 0
    %vm73 = vcmask 1043456
    %v75 = vsel %vm73, %v58, 0
    %77 = vmatprep.subr.mxu0 0.0
    %78 = vmatpush1.msra.mxu0 %v45
    %79 = vmatprep.subr.mxu0 0.0
    %80 = vmatpush1.msra.mxu0 %v46
    %81 = vmatprep.subr.mxu0 0.0
    %82 = vmatpush1.msra.mxu0 %v47
    %83 = vmatprep.subr.mxu0 0.0
    %84 = vmatpush1.msra.mxu0 %v48
    %85 = vmatprep.subr.mxu0 0.0
    %86 = vmatpush1.msra.mxu0 %v49
    %87 = vmatprep.subr.mxu0 0.0
    %88 = vmatpush1.msra.mxu0 %v50
    %89 = vmatprep.subr.mxu0 0.0
    %90 = vmatpush1.msra.mxu0 %v51
    %91 = vmatprep.subr.mxu0 0.0
    %92 = vmatpush1.msra.mxu0 %v52
    %93 = vmatprep.subr.mxu0 0.0
    %94 = vmatpush1.msra.mxu0 %v53
    %95 = vmatprep.subr.mxu0 0.0
    %96 = vmatpush1.msra.mxu0 %v54
    %97 = vmatprep.subr.mxu0 0.0
    %98 = vmatpush1.msra.mxu0 %v55
    %99 = vmatprep.subr.mxu0 0.0
    %100 = vmatpush1.msra.mxu0 %v56
    %101 = vmatprep.subr.mxu0 0.0
    %102 = vmatpush1.msra.mxu0 %v57
    %103 = vmatprep.subr.mxu0 0.0
    %104 = vmatpush1.msra.mxu0 %v75
    %105 = vmatprep.subr.mxu0 0.0
    %106 = vmatpush1.msra.mxu0 0.0
    %107 = vmatprep.subr.mxu0 0.0
    %108 = vmatpush1.msra.mxu0 0.0
    %109 = vmatprep.subr.mxu0 0.0
    %110 = vmatpush1.msra.mxu0 0.0
    %111 = vmatprep.subr.mxu0 0.0
    %112 = vmatpush1.msra.mxu0 0.0
    %113 = vmatprep.subr.mxu0 0.0
    %114 = vmatpush1.msra.mxu0 0.0
    %115 = vmatprep.subr.mxu0 0.0
    %116 = vmatpush1.msra.mxu0 0.0
    %117 = vmatprep.subr.mxu0 0.0
    %118 = vmatpush1.msra.mxu0 0.0
    %119 = vmatprep.subr.mxu0 0.0
    %120 = vmatpush1.msra.mxu0 0.0
    %121 = vmatprep.subr.mxu0 0.0
    %122 = vmatpush1.msra.mxu0 0.0
    %123 = vmatprep.subr.mxu0 0.0
    %124 = vmatpush1.msra.mxu0 0.0
    %125 = vmatprep.subr.mxu0 0.0
    %126 = vmatpush1.msra.mxu0 0.0
    %127 = vmatprep.subr.mxu0 0.0
    %128 = vmatpush1.msra.mxu0 0.0
    %129 = vmatprep.subr.mxu0 0.0
    %130 = vmatpush1.msra.mxu0 0.0
    %131 = vmatprep.subr.mxu0 0.0
    %132 = vmatpush1.msra.mxu0 0.0
    %133 = vmatprep.subr.mxu0 0.0
    %134 = vmatpush1.msra.mxu0 0.0
    %135 = vmatprep.subr.mxu0 0.0
    %136 = vmatpush1.msra.mxu0 0.0
    %137 = vmatprep.subr.mxu0 0.0
    %138 = vmatpush1.msra.mxu0 0.0
    %139 = vmatprep.subr.mxu0 0.0
    %140 = vmatpush1.msra.mxu0 0.0
    %141 = vmatprep.mubr.f32.mxu0 0.0
    %142 = vmatmul.mubr.f32.gmra.mrb[0].mxu0 %v68
    %v143 = vpop.f32.mrb[0].mxu0
    %v144 = vadd.f32 %v64, %v143
    %v145 = vpop.f32.mrb[0].mxu0
    %146 = vmatprep.mubr.f32.mxu0 0.0
    %147 = vmatmul.mubr.f32.gmra.mrb[0].mxu0 %v71
    %v148 = vpop.f32.mrb[0].mxu0
    %v149 = vadd.f32 %v64, %v148
    %v150 = vpop.f32.mrb[0].mxu0
    %151 = vdwg.mxu0
    %v152 = vmax.f32 %v144, 0.0
    %v153 = vmax.f32 %v149, 0.0
    %154 = vst [vmem:[#allocation7] sm:$0xff] %v152
    %155 = vst [vmem:[#allocation7 + $0x8] sm:$0xff] %v153
    // Predicated region
    $region22: #{tpu_custom_call.1} parent=1 // pred_check
      _
    $region23: #{tpu_custom_call.1} parent=1 // pred_check_branch
      %157 = sbr.rel (0) target = $region25
    $region24: #{tpu_custom_call.1} parent=1 // pred_region
      %s159 = ssub.s32 256, 256
      %160 = vsyncadd [#allocation4], %s159
      %s161 = sshll.u32 [#allocation7], 4
      %s162 = int_to_ptr.vmem [resolvable:$true] %s161
      %167 = dma.vmem_to_hbm [thread:$0]  %s162, 256, %s3, [#allocation4], 128, 128, 8
    $region25: #{tpu_custom_call.1} parent=1 // pred_fallthru
      _
    // Predicated region
    $region26: #{tpu_custom_call.1} parent=1 // pred_check
      _
    $region27: #{tpu_custom_call.1} parent=1 // pred_check_branch
      %169 = sbr.rel (0) target = $region29
    $region28: #{tpu_custom_call.1} parent=1 // pred_region
      %170 = dma.done [#allocation4], 256
    $region29: #{tpu_custom_call.1} parent=1 // pred_fallthru
      _
    %171 = vsyncpa [#allocation3], 1
    %172 = vsyncpa [#allocation6], 1
    %173 = vsyncpa [#allocation4], 1

</llo_original>
